<compile_context>
chip_gen: v7x
topology: tpu7x:2x2x1
jax: 0.10.0
libtpu: 0.0.40
codegen_flags: <defaults>
</compile_context>

<pallas_src>
import jax
import jax.numpy as jnp
from jax.experimental import pallas as pl
from jax.experimental.pallas import tpu as pltpu

HALO = 11    # input halo: 2 (conv0, k=5) + 9 (conv_spatial, k=7, dilation=3)
H_SPA = 9    # halo of conv0's output that conv_spatial consumes


def _make_lka_kernel(*, tiled, true_l, use_bf16):
    """Build the kernel closure.  `tiled` / `true_l` / `use_bf16` are static."""

    def kernel(*refs):
        if tiled:
            (xc_ref, xl_ref, xr_ref, w0_ref, b0_ref, ws_ref, bs_ref,
             w1_ref, b1_ref, o_ref, xpad_ref, a0_ref) = refs
        else:
            (xc_ref, w0_ref, b0_ref, ws_ref, bs_ref,
             w1_ref, b1_ref, o_ref, xpad_ref, a0_ref) = refs

        i = pl.program_id(1)
        nt = pl.num_programs(1)
        C = xc_ref.shape[1]
        TL = xc_ref.shape[2]
        EXT = TL + 2 * H_SPA           # extended region conv0 must produce

        xc = xc_ref[0].astype(jnp.float32)                     # (C, TL)

        # ---- assemble the halo/zero-padded input slab in VMEM: (C, TL+22) ----
        xpad_ref[:, HALO:HALO + TL] = xc
        if tiled:
            left = xl_ref[0, :, TL - HALO:].astype(jnp.float32)   # (C, 11)
            right = xr_ref[0, :, :HALO].astype(jnp.float32)       # (C, 11)
            xpad_ref[:, :HALO] = jnp.where(i > 0, left, 0.0)
            xpad_ref[:, HALO + TL:] = jnp.where(i < nt - 1, right, 0.0)
        else:
            zeros = jnp.zeros((C, HALO), jnp.float32)
            xpad_ref[:, :HALO] = zeros
            xpad_ref[:, HALO + TL:] = zeros

        # ---- conv0: depthwise, k=5, pad=2 (computed over extended region) ----
        # ext position j  <->  global position q = i*TL - 9 + j
        # tap k reads xpad[:, j + k]   (static shifted slices, no masks)
        w0 = w0_ref[...]                                        # (C, 5)
        acc = xpad_ref[:, 0:EXT] * w0[:, 0:1]
        for k in range(1, 5):
            acc = acc + xpad_ref[:, k:k + EXT] * w0[:, k:k + 1]
        a0_ref[...] = acc + b0_ref[...]                         # (C, EXT)

        # Zero conv0's output where the global position lies outside [0, L):
        # conv_spatial's zero padding must see zeros there (not conv0(0)+bias).
        # Only first / trailing edge tiles need this -> gate with pl.when.
        @pl.when((i == 0) | ((i + 1) * TL + H_SPA > true_l))
        def _():
            j = jax.lax.broadcasted_iota(jnp.int32, (1, EXT), 1)
            q = i * TL - H_SPA + j
            a0_ref[...] = jnp.where((q >= 0) & (q < true_l), a0_ref[...], 0.0)

        # ---- conv_spatial: depthwise, k=7, dilation=3, pad=9 ----
        # output position j' reads a0[:, j' + 3k]  (static shifted slices)
        ws = ws_ref[...]                                        # (C, 7)
        acc = a0_ref[:, 0:TL] * ws[:, 0:1]
        for k in range(1, 7):
            acc = acc + a0_ref[:, 3 * k:3 * k + TL] * ws[:, k:k + 1]
        attn = acc + bs_ref[...]                                # (C, TL)

        # ---- conv1: 1x1 pointwise -> MXU matmul (C_out,C_in) @ (C_in,TL) ----
        w1 = w1_ref[...]
        if use_bf16:                                            # static flag
            attn_mm = attn.astype(jnp.bfloat16)
            w1 = w1.astype(jnp.bfloat16)
        else:
            attn_mm = attn
        attn = jnp.dot(w1, attn_mm,
                       preferred_element_type=jnp.float32) + b1_ref[...]

        o_ref[0] = (xc * attn).astype(o_ref.dtype)

    return kernel


def lka_forward(x_ncw, params, *, max_tile_l=1024):
    """x_ncw: (N, C, L) float32; params in PyTorch Conv1d shapes."""
    w0, b0, ws, bs, w1, b1 = params
    N, C, L = x_ncw.shape

    # Weights with channels on the sublane axis (broadcast over lanes/L).
    w0_t = w0[:, 0, :]                  # (C, 5)  depthwise taps
    ws_t = ws[:, 0, :]                  # (C, 7)
    w1_t = w1[:, :, 0]                  # (C_out, C_in)
    b0_r = b0[:, None]                  # (C, 1)
    bs_r = bs[:, None]
    b1_r = b1[:, None]

    # ---- choose L tiling ----
    if L > max_tile_l:
        tiled = True
        tile_l = max_tile_l                             # multiple of 128
        num_tiles = pl.cdiv(L, tile_l)
        l_pad = num_tiles * tile_l
        x_in = x_ncw if l_pad == L else jnp.pad(
            x_ncw, ((0, 0), (0, 0), (0, l_pad - L)))    # zero pad = conv padding
    else:
        tiled = False
        tile_l = L
        num_tiles = 1
        l_pad = L
        x_in = x_ncw

    use_bf16 = C >= 128     # bf16 MXU inputs only when the matmul is non-trivial
    kernel = _make_lka_kernel(tiled=tiled, true_l=L, use_bf16=use_bf16)

    nt_last = num_tiles - 1
    x_spec = pl.BlockSpec((1, C, tile_l), lambda n, i: (n, 0, i))
    in_specs = [x_spec]
    args = [x_in]
    if tiled:
        # Neighbor tiles supply the 11-element halos (clamped at the edges;
        # the kernel zeroes the out-of-range halo via the i==0 / i==last tests).
        in_specs += [
            pl.BlockSpec((1, C, tile_l),
                         lambda n, i: (n, 0, jnp.maximum(i - 1, 0))),
            pl.BlockSpec((1, C, tile_l),
                         lambda n, i: (n, 0, jnp.minimum(i + 1, nt_last))),
        ]
        args += [x_in, x_in]
    in_specs += [
        pl.BlockSpec((C, 5), lambda n, i: (0, 0)),      # conv0 weight
        pl.BlockSpec((C, 1), lambda n, i: (0, 0)),      # conv0 bias
        pl.BlockSpec((C, 7), lambda n, i: (0, 0)),      # conv_spatial weight
        pl.BlockSpec((C, 1), lambda n, i: (0, 0)),      # conv_spatial bias
        pl.BlockSpec((C, C), lambda n, i: (0, 0)),      # conv1 weight
        pl.BlockSpec((C, 1), lambda n, i: (0, 0)),      # conv1 bias
    ]
    args += [w0_t, b0_r, ws_t, bs_r, w1_t, b1_r]

    # Advisory cost hint for the XLA scheduler.
    flops = 2 * N * l_pad * C * (C + 12)
    bytes_accessed = 4 * (N * C * l_pad * ((3 if tiled else 1) + 1)
                          + C * (5 + 7 + C + 3))
    cost = pl.CostEstimate(flops=flops, transcendentals=0,
                           bytes_accessed=bytes_accessed)

    out = pl.pallas_call(
        kernel,
        out_shape=jax.ShapeDtypeStruct((N, C, l_pad), x_ncw.dtype),
        grid_spec=pltpu.PrefetchScalarGridSpec(
            num_scalar_prefetch=0,
            grid=(N, num_tiles),
            in_specs=in_specs,
            out_specs=pl.BlockSpec((1, C, tile_l), lambda n, i: (n, 0, i)),
            scratch_shapes=[
                pltpu.VMEM((C, tile_l + 2 * HALO), jnp.float32),   # padded x
                pltpu.VMEM((C, tile_l + 2 * H_SPA), jnp.float32),  # conv0 out
            ],
        ),
        compiler_params=pltpu.CompilerParams(
            dimension_semantics=("parallel", "parallel"),
            vmem_limit_bytes=48 * 1024 * 1024,
        ),
        cost_estimate=cost,
    )(*args)

    if l_pad != L:
        out = out[:, :, :L]
    return out


def lka_ref(x, params):
    """Pure-JAX reference (lax convs) for correctness checking."""
    w0, b0, ws, bs, w1, b1 = params
    C = x.shape[1]
    dn = jax.lax.conv_dimension_numbers(x.shape, w0.shape, ('NCH', 'OIH', 'NCH'))
    a = jax.lax.conv_general_dilated(x, w0, (1,), [(2, 2)], dimension_numbers=dn,
                                     feature_group_count=C) + b0[None, :, None]
    a = jax.lax.conv_general_dilated(a, ws, (1,), [(9, 9)], rhs_dilation=(3,),
                                     dimension_numbers=dn,
                                     feature_group_count=C) + bs[None, :, None]
    a = jax.lax.conv_general_dilated(a, w1, (1,), [(0, 0)],
                                     dimension_numbers=dn) + b1[None, :, None]
    return x * a


if __name__ == "__main__":
    key = jax.random.PRNGKey(0)
    kx, k0, kb0, ks, kbs, k1, kb1, kx2 = jax.random.split(key, 8)

    N, C, L = 2, 8, 32
    x = jax.random.normal(kx, (N, C, L), dtype=jnp.float32)
    params = (
        0.2 * jax.random.normal(k0, (C, 1, 5), dtype=jnp.float32),   # conv0.weight
        0.1 * jax.random.normal(kb0, (C,), dtype=jnp.float32),       # conv0.bias
        0.2 * jax.random.normal(ks, (C, 1, 7), dtype=jnp.float32),   # conv_spatial.weight
        0.1 * jax.random.normal(kbs, (C,), dtype=jnp.float32),       # conv_spatial.bias
        0.2 * jax.random.normal(k1, (C, C, 1), dtype=jnp.float32),   # conv1.weight
        0.1 * jax.random.normal(kb1, (C,), dtype=jnp.float32),       # conv1.bias
    )

    # Single-tile path (small L).
    out = jax.block_until_ready(lka_forward(x, params))
    ref = jax.block_until_ready(lka_ref(x, params))
    assert out.shape == (N, C, L)
    assert jnp.allclose(out, ref, atol=1e-5, rtol=1e-5), "single-tile mismatch"

    # Exercise the L-tiled path (multi-tile halos + ragged last tile) by
    # forcing a small tile size.
    L2 = 160
    x2 = jax.random.normal(kx2, (N, C, L2), dtype=jnp.float32)
    out2 = jax.block_until_ready(lka_forward(x2, params, max_tile_l=128))
    ref2 = jax.block_until_ready(lka_ref(x2, params))
    assert out2.shape == (N, C, L2)
    assert jnp.allclose(out2, ref2, atol=1e-5, rtol=1e-5), "tiled mismatch"

    print("KERNEL_OK")
</pallas_src>

<mosaic_0001>
module attributes {stable_mosaic.version = 11 : i64} {
  func.func @kernel(%arg0: i32, %arg1: i32, %arg2: memref<1x8x32xf32, #tpu.memory_space<vmem>>, %arg3: memref<8x5xf32, #tpu.memory_space<vmem>>, %arg4: memref<8x1xf32, #tpu.memory_space<vmem>>, %arg5: memref<8x7xf32, #tpu.memory_space<vmem>>, %arg6: memref<8x1xf32, #tpu.memory_space<vmem>>, %arg7: memref<8x8xf32, #tpu.memory_space<vmem>>, %arg8: memref<8x1xf32, #tpu.memory_space<vmem>>, %arg9: memref<1x8x32xf32, #tpu.memory_space<vmem>>, %arg10: memref<8x54xf32, #tpu.memory_space<vmem>>, %arg11: memref<8x50xf32, #tpu.memory_space<vmem>>) attributes {dimension_semantics = [#tpu.dimension_semantics<parallel>, #tpu.dimension_semantics<parallel>], iteration_bounds = array<i64: 2, 1>, scalar_prefetch = 0 : i64, scratch_operands = 2 : i64, tpu.core_type = #tpu.core_type<tc>, window_params = [{transform_indices = @transform_0, window_bounds = array<i64: 1, 8, 32>}, {pipeline_mode = #tpu.pipeline_mode<synchronous>, transform_indices = @transform_1, window_bounds = array<i64: 8, 5>}, {pipeline_mode = #tpu.pipeline_mode<synchronous>, transform_indices = @transform_2, window_bounds = array<i64: 8, 1>}, {pipeline_mode = #tpu.pipeline_mode<synchronous>, transform_indices = @transform_3, window_bounds = array<i64: 8, 7>}, {pipeline_mode = #tpu.pipeline_mode<synchronous>, transform_indices = @transform_4, window_bounds = array<i64: 8, 1>}, {pipeline_mode = #tpu.pipeline_mode<synchronous>, transform_indices = @transform_5, window_bounds = array<i64: 8, 8>}, {pipeline_mode = #tpu.pipeline_mode<synchronous>, transform_indices = @transform_6, window_bounds = array<i64: 8, 1>}, {transform_indices = @transform_7, window_bounds = array<i64: 1, 8, 32>}]} {
    %c0 = arith.constant 0 : index
    %c0_0 = arith.constant 0 : index
    %c0_1 = arith.constant 0 : index
    %0 = vector.load %arg2[%c0, %c0_0, %c0_1] : memref<1x8x32xf32, #tpu.memory_space<vmem>>, vector<1x8x32xf32>
    %1 = vector.shape_cast %0 : vector<1x8x32xf32> to vector<8x32xf32>
    %c0_2 = arith.constant 0 : index
    %c11 = arith.constant 11 : index
    %2 = vector.load %arg10[%c0_2, %c11] : memref<8x54xf32, #tpu.memory_space<vmem>>, vector<8x32xf32>
    tpu.vector_store %arg10[%c0_2, %c11], %1 {strides = array<i32>} : memref<8x54xf32, #tpu.memory_space<vmem>>, vector<8x32xf32>,
    %cst = arith.constant 0.000000e+00 : f32
    %3 = vector.broadcast %cst : f32 to vector<8x11xf32>
    %c0_3 = arith.constant 0 : index
    %c0_4 = arith.constant 0 : index
    %4 = vector.load %arg10[%c0_3, %c0_4] : memref<8x54xf32, #tpu.memory_space<vmem>>, vector<8x11xf32>
    tpu.vector_store %arg10[%c0_3, %c0_4], %3 {strides = array<i32>} : memref<8x54xf32, #tpu.memory_space<vmem>>, vector<8x11xf32>,
    %c0_5 = arith.constant 0 : index
    %c43 = arith.constant 43 : index
    %5 = vector.load %arg10[%c0_5, %c43] : memref<8x54xf32, #tpu.memory_space<vmem>>, vector<8x11xf32>
    tpu.vector_store %arg10[%c0_5, %c43], %3 {strides = array<i32>} : memref<8x54xf32, #tpu.memory_space<vmem>>, vector<8x11xf32>,
    %c0_6 = arith.constant 0 : index
    %c0_7 = arith.constant 0 : index
    %6 = vector.load %arg3[%c0_6, %c0_7] : memref<8x5xf32, #tpu.memory_space<vmem>>, vector<8x5xf32>
    %c0_8 = arith.constant 0 : index
    %c0_9 = arith.constant 0 : index
    %7 = vector.load %arg10[%c0_8, %c0_9] : memref<8x54xf32, #tpu.memory_space<vmem>>, vector<8x50xf32>
    %8 = vector.extract_strided_slice %6 {offsets = [0, 0], sizes = [8, 1], strides = [1, 1]} : vector<8x5xf32> to vector<8x1xf32>
    %9 = vector.broadcast %8 : vector<8x1xf32> to vector<8x50xf32>
    %10 = arith.mulf %7, %9 : vector<8x50xf32>
    %c0_10 = arith.constant 0 : index
    %c1 = arith.constant 1 : index
    %11 = vector.load %arg10[%c0_10, %c1] : memref<8x54xf32, #tpu.memory_space<vmem>>, vector<8x50xf32>
    %12 = vector.extract_strided_slice %6 {offsets = [0, 1], sizes = [8, 1], strides = [1, 1]} : vector<8x5xf32> to vector<8x1xf32>
    %13 = vector.broadcast %12 : vector<8x1xf32> to vector<8x50xf32>
    %14 = arith.mulf %11, %13 : vector<8x50xf32>
    %15 = arith.addf %10, %14 : vector<8x50xf32>
    %c0_11 = arith.constant 0 : index
    %c2 = arith.constant 2 : index
    %16 = vector.load %arg10[%c0_11, %c2] : memref<8x54xf32, #tpu.memory_space<vmem>>, vector<8x50xf32>
    %17 = vector.extract_strided_slice %6 {offsets = [0, 2], sizes = [8, 1], strides = [1, 1]} : vector<8x5xf32> to vector<8x1xf32>
    %18 = vector.broadcast %17 : vector<8x1xf32> to vector<8x50xf32>
    %19 = arith.mulf %16, %18 : vector<8x50xf32>
    %20 = arith.addf %15, %19 : vector<8x50xf32>
    %c0_12 = arith.constant 0 : index
    %c3 = arith.constant 3 : index
    %21 = vector.load %arg10[%c0_12, %c3] : memref<8x54xf32, #tpu.memory_space<vmem>>, vector<8x50xf32>
    %22 = vector.extract_strided_slice %6 {offsets = [0, 3], sizes = [8, 1], strides = [1, 1]} : vector<8x5xf32> to vector<8x1xf32>
    %23 = vector.broadcast %22 : vector<8x1xf32> to vector<8x50xf32>
    %24 = arith.mulf %21, %23 : vector<8x50xf32>
    %25 = arith.addf %20, %24 : vector<8x50xf32>
    %c0_13 = arith.constant 0 : index
    %c4 = arith.constant 4 : index
    %26 = vector.load %arg10[%c0_13, %c4] : memref<8x54xf32, #tpu.memory_space<vmem>>, vector<8x50xf32>
    %27 = vector.extract_strided_slice %6 {offsets = [0, 4], sizes = [8, 1], strides = [1, 1]} : vector<8x5xf32> to vector<8x1xf32>
    %28 = vector.broadcast %27 : vector<8x1xf32> to vector<8x50xf32>
    %29 = arith.mulf %26, %28 : vector<8x50xf32>
    %30 = arith.addf %25, %29 : vector<8x50xf32>
    %c0_14 = arith.constant 0 : index
    %c0_15 = arith.constant 0 : index
    %31 = vector.load %arg4[%c0_14, %c0_15] : memref<8x1xf32, #tpu.memory_space<vmem>>, vector<8x1xf32>
    %32 = vector.broadcast %31 : vector<8x1xf32> to vector<8x50xf32>
    %33 = arith.addf %30, %32 : vector<8x50xf32>
    %c0_16 = arith.constant 0 : index
    %c0_17 = arith.constant 0 : index
    %34 = vector.load %arg11[%c0_16, %c0_17] : memref<8x50xf32, #tpu.memory_space<vmem>>, vector<8x50xf32>
    tpu.vector_store %arg11[%c0_16, %c0_17], %33 {strides = array<i32>} : memref<8x50xf32, #tpu.memory_space<vmem>>, vector<8x50xf32>,
    %c0_i32 = arith.constant 0 : i32
    %35 = arith.cmpi eq, %arg1, %c0_i32 : i32
    %c1_i32 = arith.constant 1 : i32
    %36 = arith.addi %arg1, %c1_i32 : i32
    %c32_i32 = arith.constant 32 : i32
    %37 = arith.muli %36, %c32_i32 : i32
    %c9_i32 = arith.constant 9 : i32
    %38 = arith.addi %37, %c9_i32 : i32
    %c32_i32_18 = arith.constant 32 : i32
    %39 = arith.cmpi sgt, %38, %c32_i32_18 : i32
    %40 = arith.ori %35, %39 : i1
    %41 = arith.extui %40 : i1 to i32
    %c0_i32_19 = arith.constant 0 : i32
    %42 = arith.cmpi ne, %41, %c0_i32_19 : i32
    scf.if %42 {
      %90 = tpu.iota {dimensions = array<i32: 1>} : vector<1x50xi32>
      %c32_i32_41 = arith.constant 32 : i32
      %91 = arith.muli %arg1, %c32_i32_41 : i32
      %c9_i32_42 = arith.constant 9 : i32
      %92 = arith.subi %91, %c9_i32_42 : i32
      %93 = vector.broadcast %92 : i32 to vector<1x50xi32>
      %94 = arith.addi %93, %90 : vector<1x50xi32>
      %c0_i32_43 = arith.constant 0 : i32
      %95 = vector.broadcast %c0_i32_43 : i32 to vector<1x50xi32>
      %96 = arith.cmpi sge, %94, %95 : vector<1x50xi32>
      %c32_i32_44 = arith.constant 32 : i32
      %97 = vector.broadcast %c32_i32_44 : i32 to vector<1x50xi32>
      %98 = arith.cmpi slt, %94, %97 : vector<1x50xi32>
      %99 = arith.andi %96, %98 : vector<1x50xi1>
      %c0_45 = arith.constant 0 : index
      %c0_46 = arith.constant 0 : index
      %100 = vector.load %arg11[%c0_45, %c0_46] : memref<8x50xf32, #tpu.memory_space<vmem>>, vector<8x50xf32>
      %cst_47 = arith.constant 0.000000e+00 : f32
      %101 = vector.shape_cast %99 : vector<1x50xi1> to vector<1x50xi1>
      %102 = vector.broadcast %101 : vector<1x50xi1> to vector<8x50xi1>
      %103 = vector.broadcast %cst_47 : f32 to vector<8x50xf32>
      %104 = arith.select %102, %100, %103 : vector<8x50xi1>, vector<8x50xf32>
      %c0_48 = arith.constant 0 : index
      %c0_49 = arith.constant 0 : index
      %105 = vector.load %arg11[%c0_48, %c0_49] : memref<8x50xf32, #tpu.memory_space<vmem>>, vector<8x50xf32>
      tpu.vector_store %arg11[%c0_48, %c0_49], %104 {strides = array<i32>} : memref<8x50xf32, #tpu.memory_space<vmem>>, vector<8x50xf32>,
    } else {
    }
    %c0_20 = arith.constant 0 : index
    %c0_21 = arith.constant 0 : index
    %43 = vector.load %arg5[%c0_20, %c0_21] : memref<8x7xf32, #tpu.memory_space<vmem>>, vector<8x7xf32>
    %c0_22 = arith.constant 0 : index
    %c0_23 = arith.constant 0 : index
    %44 = vector.load %arg11[%c0_22, %c0_23] : memref<8x50xf32, #tpu.memory_space<vmem>>, vector<8x32xf32>
    %45 = vector.extract_strided_slice %43 {offsets = [0, 0], sizes = [8, 1], strides = [1, 1]} : vector<8x7xf32> to vector<8x1xf32>
    %46 = vector.broadcast %45 : vector<8x1xf32> to vector<8x32xf32>
    %47 = arith.mulf %44, %46 : vector<8x32xf32>
    %c0_24 = arith.constant 0 : index
    %c3_25 = arith.constant 3 : index
    %48 = vector.load %arg11[%c0_24, %c3_25] : memref<8x50xf32, #tpu.memory_space<vmem>>, vector<8x32xf32>
    %49 = vector.extract_strided_slice %43 {offsets = [0, 1], sizes = [8, 1], strides = [1, 1]} : vector<8x7xf32> to vector<8x1xf32>
    %50 = vector.broadcast %49 : vector<8x1xf32> to vector<8x32xf32>
    %51 = arith.mulf %48, %50 : vector<8x32xf32>
    %52 = arith.addf %47, %51 : vector<8x32xf32>
    %c0_26 = arith.constant 0 : index
    %c6 = arith.constant 6 : index
    %53 = vector.load %arg11[%c0_26, %c6] : memref<8x50xf32, #tpu.memory_space<vmem>>, vector<8x32xf32>
    %54 = vector.extract_strided_slice %43 {offsets = [0, 2], sizes = [8, 1], strides = [1, 1]} : vector<8x7xf32> to vector<8x1xf32>
    %55 = vector.broadcast %54 : vector<8x1xf32> to vector<8x32xf32>
    %56 = arith.mulf %53, %55 : vector<8x32xf32>
    %57 = arith.addf %52, %56 : vector<8x32xf32>
    %c0_27 = arith.constant 0 : index
    %c9 = arith.constant 9 : index
    %58 = vector.load %arg11[%c0_27, %c9] : memref<8x50xf32, #tpu.memory_space<vmem>>, vector<8x32xf32>
    %59 = vector.extract_strided_slice %43 {offsets = [0, 3], sizes = [8, 1], strides = [1, 1]} : vector<8x7xf32> to vector<8x1xf32>
    %60 = vector.broadcast %59 : vector<8x1xf32> to vector<8x32xf32>
    %61 = arith.mulf %58, %60 : vector<8x32xf32>
    %62 = arith.addf %57, %61 : vector<8x32xf32>
    %c0_28 = arith.constant 0 : index
    %c12 = arith.constant 12 : index
    %63 = vector.load %arg11[%c0_28, %c12] : memref<8x50xf32, #tpu.memory_space<vmem>>, vector<8x32xf32>
    %64 = vector.extract_strided_slice %43 {offsets = [0, 4], sizes = [8, 1], strides = [1, 1]} : vector<8x7xf32> to vector<8x1xf32>
    %65 = vector.broadcast %64 : vector<8x1xf32> to vector<8x32xf32>
    %66 = arith.mulf %63, %65 : vector<8x32xf32>
    %67 = arith.addf %62, %66 : vector<8x32xf32>
    %c0_29 = arith.constant 0 : index
    %c15 = arith.constant 15 : index
    %68 = vector.load %arg11[%c0_29, %c15] : memref<8x50xf32, #tpu.memory_space<vmem>>, vector<8x32xf32>
    %69 = vector.extract_strided_slice %43 {offsets = [0, 5], sizes = [8, 1], strides = [1, 1]} : vector<8x7xf32> to vector<8x1xf32>
    %70 = vector.broadcast %69 : vector<8x1xf32> to vector<8x32xf32>
    %71 = arith.mulf %68, %70 : vector<8x32xf32>
    %72 = arith.addf %67, %71 : vector<8x32xf32>
    %c0_30 = arith.constant 0 : index
    %c18 = arith.constant 18 : index
    %73 = vector.load %arg11[%c0_30, %c18] : memref<8x50xf32, #tpu.memory_space<vmem>>, vector<8x32xf32>
    %74 = vector.extract_strided_slice %43 {offsets = [0, 6], sizes = [8, 1], strides = [1, 1]} : vector<8x7xf32> to vector<8x1xf32>
    %75 = vector.broadcast %74 : vector<8x1xf32> to vector<8x32xf32>
    %76 = arith.mulf %73, %75 : vector<8x32xf32>
    %77 = arith.addf %72, %76 : vector<8x32xf32>
    %c0_31 = arith.constant 0 : index
    %c0_32 = arith.constant 0 : index
    %78 = vector.load %arg6[%c0_31, %c0_32] : memref<8x1xf32, #tpu.memory_space<vmem>>, vector<8x1xf32>
    %79 = vector.broadcast %78 : vector<8x1xf32> to vector<8x32xf32>
    %80 = arith.addf %77, %79 : vector<8x32xf32>
    %c0_33 = arith.constant 0 : index
    %c0_34 = arith.constant 0 : index
    %81 = vector.load %arg7[%c0_33, %c0_34] : memref<8x8xf32, #tpu.memory_space<vmem>>, vector<8x8xf32>
    %cst_35 = arith.constant dense<0.000000e+00> : vector<8x32xf32>
    %82 = tpu.matmul %81, %80, %cst_35 {dimension_numbers = #tpu.dot_dimension_numbers<[1], [0], [0], [1], [0, 0, 1, 1], [], []>} : vector<8x8xf32>, vector<8x32xf32>, vector<8x32xf32> -> vector<8x32xf32>
    %c0_36 = arith.constant 0 : index
    %c0_37 = arith.constant 0 : index
    %83 = vector.load %arg8[%c0_36, %c0_37] : memref<8x1xf32, #tpu.memory_space<vmem>>, vector<8x1xf32>
    %84 = vector.broadcast %83 : vector<8x1xf32> to vector<8x32xf32>
    %85 = arith.addf %82, %84 : vector<8x32xf32>
    %86 = arith.mulf %1, %85 : vector<8x32xf32>
    %c0_38 = arith.constant 0 : index
    %c0_39 = arith.constant 0 : index
    %c0_40 = arith.constant 0 : index
    %87 = vector.load %arg9[%c0_38, %c0_39, %c0_40] : memref<1x8x32xf32, #tpu.memory_space<vmem>>, vector<1x8x32xf32>
    %88 = vector.shape_cast %87 : vector<1x8x32xf32> to vector<8x32xf32>
    %89 = vector.shape_cast %86 : vector<8x32xf32> to vector<1x8x32xf32>
    tpu.vector_store %arg9[%c0_38, %c0_39, %c0_40], %89 {strides = array<i32>} : memref<1x8x32xf32, #tpu.memory_space<vmem>>, vector<1x8x32xf32>,
    return
  }
  func.func @transform_0(%arg0: i32, %arg1: i32) -> (i32, i32, i32) {
    %c0_i32 = arith.constant 0 : i32
    %c0_i32_0 = arith.constant 0 : i32
    return %arg0, %c0_i32, %arg1 : i32, i32, i32
  }
  func.func @transform_1(%arg0: i32, %arg1: i32) -> (i32, i32) {
    %c0_i32 = arith.constant 0 : i32
    %c0_i32_0 = arith.constant 0 : i32
    %c0_i32_1 = arith.constant 0 : i32
    return %c0_i32, %c0_i32_0 : i32, i32
  }
  func.func @transform_2(%arg0: i32, %arg1: i32) -> (i32, i32) {
    %c0_i32 = arith.constant 0 : i32
    %c0_i32_0 = arith.constant 0 : i32
    %c0_i32_1 = arith.constant 0 : i32
    return %c0_i32, %c0_i32_0 : i32, i32
  }
  func.func @transform_3(%arg0: i32, %arg1: i32) -> (i32, i32) {
    %c0_i32 = arith.constant 0 : i32
    %c0_i32_0 = arith.constant 0 : i32
    %c0_i32_1 = arith.constant 0 : i32
    return %c0_i32, %c0_i32_0 : i32, i32
  }
  func.func @transform_4(%arg0: i32, %arg1: i32) -> (i32, i32) {
    %c0_i32 = arith.constant 0 : i32
    %c0_i32_0 = arith.constant 0 : i32
    %c0_i32_1 = arith.constant 0 : i32
    return %c0_i32, %c0_i32_0 : i32, i32
  }
  func.func @transform_5(%arg0: i32, %arg1: i32) -> (i32, i32) {
    %c0_i32 = arith.constant 0 : i32
    %c0_i32_0 = arith.constant 0 : i32
    %c0_i32_1 = arith.constant 0 : i32
    return %c0_i32, %c0_i32_0 : i32, i32
  }
  func.func @transform_6(%arg0: i32, %arg1: i32) -> (i32, i32) {
    %c0_i32 = arith.constant 0 : i32
    %c0_i32_0 = arith.constant 0 : i32
    %c0_i32_1 = arith.constant 0 : i32
    return %c0_i32, %c0_i32_0 : i32, i32
  }
  func.func @transform_7(%arg0: i32, %arg1: i32) -> (i32, i32, i32) {
    %c0_i32 = arith.constant 0 : i32
    %c0_i32_0 = arith.constant 0 : i32
    return %arg0, %c0_i32, %arg1 : i32, i32, i32
  }
}

</mosaic_0001>

<llo_original>
// kernel: tpu_custom_call.1
$region0: #{tpu_custom_call.1}
  #allocation0 [shape = 'u32[]', space=smem, size = 0x4, offset = 0x4, fixed_abs, tag = 'smem constant byte address 0x4 - core index']
  #allocation1 [shape = 'u32[144,128]{1,0:T(1,128)}', space=vmem, size = 0x12000, scoped, tag = 'internal scratch']
  #allocation2 [shape = 'f32[8,54]{1,0:T(8,128)}', space=vmem, size = 0x1000, scoped, tag = 'scratch operand']
  #allocation3 [shape = 'f32[8,50]{1,0:T(8,128)}', space=vmem, size = 0x1000, scoped, tag = 'scratch operand']
  %s0 = inlined_call_operand.vmem [shape: f32[2,8,32], index: 0, kind: input, shape index: {}]
  %s1 = inlined_call_operand.vmem [shape: f32[8,5], index: 1, kind: input, shape index: {}]
  %s2 = inlined_call_operand.vmem [shape: f32[8,1], index: 2, kind: input, shape index: {}]
  %s3 = inlined_call_operand.vmem [shape: f32[8,7], index: 3, kind: input, shape index: {}]
  %s4 = inlined_call_operand.vmem [shape: f32[8,1], index: 4, kind: input, shape index: {}]
  %s5 = inlined_call_operand.vmem [shape: f32[8,8], index: 5, kind: input, shape index: {}]
  %s6 = inlined_call_operand.vmem [shape: f32[8,1], index: 6, kind: input, shape index: {}]
  %s7 = inlined_call_operand.hbm [shape: f32[2,8,32], index: 7, kind: output, shape index: {}]
  %s8 = sld [smem:[#allocation0]]
  $region65: #{tpu_custom_call.1} parent=0
    _
  %s10 = ssub.s32 1, %s8
  %s11 = scalar_select 0, %s10, %s8
  $region1: #{tpu_custom_call.1} parent=0
    #allocation4 [shape = 'u8[8192]{0}', space=vmem, size = 0x2000, scoped, tag = 'output window, operand 0']
    #allocation5 [shape = 's32[2]{0}', space=sflag, size = 0x8, scoped, tag = 'scoped memory for tpu_custom_call.1']
    %12 = vsyncpa [#allocation5], 0
    %s13 = scalar_lea.sflag [#allocation5], 1
    %14 = vsyncpa %s13, 0
    loop: start=0, step=1, limit=4
    $region2: #{tpu_custom_call.1} parent=1 // loop_pre_header
      _
    $region3: #{tpu_custom_call.1} parent=1 // loop_header
      %s16 = sphi 0, %s20
      %p17 = scmp.ge.s32.totalorder %s16, 4
      %s23 = sphi 0, %s35
      %s24 = sphi 0, %s31
      %s25 = sphi 0, %s23
      %s26 = sphi 0, %s24
      %s27 = sphi 0, %s25
      %s28 = sphi 0, %s26
      %s40 = sphi 0, %s42
      %s43 = sphi 0, %s40
      %s44 = sphi 0, %s43
      %s60 = sphi 0, %s44
      %s64 = sphi 0, %s64
      %s66 = sphi 0, %s64
      %s67 = sphi 0, %s66
      %s81 = sphi 0, %s67
      %s85 = sphi 0, %s85
      %s87 = sphi 0, %s85
      %s88 = sphi 0, %s87
      %s102 = sphi 0, %s88
      %s106 = sphi 0, %s106
      %s108 = sphi 0, %s106
      %s109 = sphi 0, %s108
      %s123 = sphi 0, %s109
      %s127 = sphi 0, %s127
      %s129 = sphi 0, %s127
      %s130 = sphi 0, %s129
      %s144 = sphi 0, %s130
      %s148 = sphi 0, %s148
      %s150 = sphi 0, %s148
      %s151 = sphi 0, %s150
      %s165 = sphi 0, %s151
      %s169 = sphi 0, %s169
      %s171 = sphi 0, %s169
      %s172 = sphi 0, %s171
      %s186 = sphi 0, %s172
      %s194 = sphi 0, %s196
      %s197 = sphi 0, %s194
      %s198 = sphi 0, %s197
      %s214 = sphi 0, %s198
    $region4: #{tpu_custom_call.1} parent=1 // loop_header_branch
      %19 = sbr.rel (%p17) target = $region8
    $region5: #{tpu_custom_call.1} parent=1 // loop_body
      %s21 = ssub.s32 %s16, 1
      %s22 = ssub.s32 %s16, 2
      %s29 = sadd.s32 1, %s24
      %p30 = scmp.ge.s32.totalorder %s29, 1
      %s31 = scalar_select %p30, 0, %s29
      %s32 = sadd.s32 1, %s23
      %s33 = scalar_select %p30, %s32, %s23
      %p34 = scmp.ge.s32.totalorder %s33, 2
      %s35 = scalar_select %p34, 0, %s33
      %s36 = ssub.s32 %s23, %s35
      %s37 = ssub.s32 %s24, %s31
      %s38 = sor.u32 %s36, %s37
      %p39 = scmp.eq.s32.totalorder %s38, 0
      %s41 = sadd.s32 %s40, 1
      %s42 = scalar_select %p39, %s40, %s41
      %p45 = pneg %p39
      %p46 = scmp.eq.s32.totalorder %s16, 1
      %p47 = por %p45, %p46
      %p48 = scmp.ne.s32.totalorder %s40, %s43
      %p49 = scmp.eq.s32.totalorder %s16, 0
      %p50 = por %p48, %p49
      %p51 = scmp.ne.s32.totalorder %s40, %s43
      %p52 = scmp.eq.s32.totalorder %s21, 1
      %p53 = por %p51, %p52
      %p54 = scmp.ne.s32.totalorder %s43, %s44
      %p55 = scmp.eq.s32.totalorder %s21, 0
      %p56 = por %p54, %p55
      %p57 = scmp.ne.s32.totalorder %s43, %s44
      %p58 = scmp.eq.s32.totalorder %s22, 1
      %p59 = por %p57, %p58
      %p61 = scmp.ne.s32.totalorder %s44, %s60
      %p62 = scmp.eq.s32.totalorder %s22, 0
      %p63 = por %p61, %p62
      %s65 = sadd.s32 %s64, 1
      %p68 = scmp.eq.s32.totalorder %s16, 1
      %p69 = scmp.ne.s32.totalorder %s64, %s66
      %p70 = scmp.eq.s32.totalorder %s16, 0
      %p71 = por %p69, %p70
      %p72 = scmp.ne.s32.totalorder %s64, %s66
      %p73 = scmp.eq.s32.totalorder %s21, 1
      %p74 = por %p72, %p73
      %p75 = scmp.ne.s32.totalorder %s66, %s67
      %p76 = scmp.eq.s32.totalorder %s21, 0
      %p77 = por %p75, %p76
      %p78 = scmp.ne.s32.totalorder %s66, %s67
      %p79 = scmp.eq.s32.totalorder %s22, 1
      %p80 = por %p78, %p79
      %p82 = scmp.ne.s32.totalorder %s67, %s81
      %p83 = scmp.eq.s32.totalorder %s22, 0
      %p84 = por %p82, %p83
      %s86 = sadd.s32 %s85, 1
      %p89 = scmp.eq.s32.totalorder %s16, 1
      %p90 = scmp.ne.s32.totalorder %s85, %s87
      %p91 = scmp.eq.s32.totalorder %s16, 0
      %p92 = por %p90, %p91
      %p93 = scmp.ne.s32.totalorder %s85, %s87
      %p94 = scmp.eq.s32.totalorder %s21, 1
      %p95 = por %p93, %p94
      %p96 = scmp.ne.s32.totalorder %s87, %s88
      %p97 = scmp.eq.s32.totalorder %s21, 0
      %p98 = por %p96, %p97
      %p99 = scmp.ne.s32.totalorder %s87, %s88
      %p100 = scmp.eq.s32.totalorder %s22, 1
      %p101 = por %p99, %p100
      %p103 = scmp.ne.s32.totalorder %s88, %s102
      %p104 = scmp.eq.s32.totalorder %s22, 0
      %p105 = por %p103, %p104
      %s107 = sadd.s32 %s106, 1
      %p110 = scmp.eq.s32.totalorder %s16, 1
      %p111 = scmp.ne.s32.totalorder %s106, %s108
      %p112 = scmp.eq.s32.totalorder %s16, 0
      %p113 = por %p111, %p112
      %p114 = scmp.ne.s32.totalorder %s106, %s108
      %p115 = scmp.eq.s32.totalorder %s21, 1
      %p116 = por %p114, %p115
      %p117 = scmp.ne.s32.totalorder %s108, %s109
      %p118 = scmp.eq.s32.totalorder %s21, 0
      %p119 = por %p117, %p118
      %p120 = scmp.ne.s32.totalorder %s108, %s109
      %p121 = scmp.eq.s32.totalorder %s22, 1
      %p122 = por %p120, %p121
      %p124 = scmp.ne.s32.totalorder %s109, %s123
      %p125 = scmp.eq.s32.totalorder %s22, 0
      %p126 = por %p124, %p125
      %s128 = sadd.s32 %s127, 1
      %p131 = scmp.eq.s32.totalorder %s16, 1
      %p132 = scmp.ne.s32.totalorder %s127, %s129
      %p133 = scmp.eq.s32.totalorder %s16, 0
      %p134 = por %p132, %p133
      %p135 = scmp.ne.s32.totalorder %s127, %s129
      %p136 = scmp.eq.s32.totalorder %s21, 1
      %p137 = por %p135, %p136
      %p138 = scmp.ne.s32.totalorder %s129, %s130
      %p139 = scmp.eq.s32.totalorder %s21, 0
      %p140 = por %p138, %p139
      %p141 = scmp.ne.s32.totalorder %s129, %s130
      %p142 = scmp.eq.s32.totalorder %s22, 1
      %p143 = por %p141, %p142
      %p145 = scmp.ne.s32.totalorder %s130, %s144
      %p146 = scmp.eq.s32.totalorder %s22, 0
      %p147 = por %p145, %p146
      %s149 = sadd.s32 %s148, 1
      %p152 = scmp.eq.s32.totalorder %s16, 1
      %p153 = scmp.ne.s32.totalorder %s148, %s150
      %p154 = scmp.eq.s32.totalorder %s16, 0
      %p155 = por %p153, %p154
      %p156 = scmp.ne.s32.totalorder %s148, %s150
      %p157 = scmp.eq.s32.totalorder %s21, 1
      %p158 = por %p156, %p157
      %p159 = scmp.ne.s32.totalorder %s150, %s151
      %p160 = scmp.eq.s32.totalorder %s21, 0
      %p161 = por %p159, %p160
      %p162 = scmp.ne.s32.totalorder %s150, %s151
      %p163 = scmp.eq.s32.totalorder %s22, 1
      %p164 = por %p162, %p163
      %p166 = scmp.ne.s32.totalorder %s151, %s165
      %p167 = scmp.eq.s32.totalorder %s22, 0
      %p168 = por %p166, %p167
      %s170 = sadd.s32 %s169, 1
      %p173 = scmp.eq.s32.totalorder %s16, 1
      %p174 = scmp.ne.s32.totalorder %s169, %s171
      %p175 = scmp.eq.s32.totalorder %s16, 0
      %p176 = por %p174, %p175
      %p177 = scmp.ne.s32.totalorder %s169, %s171
      %p178 = scmp.eq.s32.totalorder %s21, 1
      %p179 = por %p177, %p178
      %p180 = scmp.ne.s32.totalorder %s171, %s172
      %p181 = scmp.eq.s32.totalorder %s21, 0
      %p182 = por %p180, %p181
      %p183 = scmp.ne.s32.totalorder %s171, %s172
      %p184 = scmp.eq.s32.totalorder %s22, 1
      %p185 = por %p183, %p184
      %p187 = scmp.ne.s32.totalorder %s172, %s186
      %p188 = scmp.eq.s32.totalorder %s22, 0
      %p189 = por %p187, %p188
      %s190 = ssub.s32 %s23, %s35
      %s191 = ssub.s32 %s24, %s31
      %s192 = sor.u32 %s190, %s191
      %p193 = scmp.eq.s32.totalorder %s192, 0
      %s195 = sadd.s32 %s194, 1
      %s196 = scalar_select %p193, %s194, %s195
      %p199 = pneg %p193
      %p200 = scmp.eq.s32.totalorder %s16, 1
      %p201 = por %p199, %p200
      %p202 = scmp.ne.s32.totalorder %s194, %s197
      %p203 = scmp.eq.s32.totalorder %s16, 0
      %p204 = por %p202, %p203
      %p205 = scmp.ne.s32.totalorder %s194, %s197
      %p206 = scmp.eq.s32.totalorder %s21, 1
      %p207 = por %p205, %p206
      %p208 = scmp.ne.s32.totalorder %s197, %s198
      %p209 = scmp.eq.s32.totalorder %s21, 0
      %p210 = por %p208, %p209
      %p211 = scmp.ne.s32.totalorder %s197, %s198
      %p212 = scmp.eq.s32.totalorder %s22, 1
      %p213 = por %p211, %p212
      %p215 = scmp.ne.s32.totalorder %s198, %s214
      %p216 = scmp.eq.s32.totalorder %s22, 0
      %p217 = por %p215, %p216
      %p218 = scmp.le.s32.totalorder 1, %s16
      %p219 = scmp.lt.s32.totalorder %s16, 3
      %p220 = pnand %p218, %p219
      %p221 = pneg %p220
      // Predicated region
      $region9: #{tpu_custom_call.1} parent=5 // pred_check
        _
      $region10: #{tpu_custom_call.1} parent=5 // pred_check_branch
        %223 = sbr.rel (%p220) target = $region12
      $region11: #{tpu_custom_call.1} parent=5 // pred_region
        %s224 = ssub.s32 %s16, 1
        // Predicated region
        $region13: #{tpu_custom_call.1} parent=11 // pred_check
          %p225 = pneg %p77
        $region14: #{tpu_custom_call.1} parent=11 // pred_check_branch
          %227 = sbr.rel (%p225) target = $region16
        $region15: #{tpu_custom_call.1} parent=11 // pred_region
          _
        $region16: #{tpu_custom_call.1} parent=11 // pred_fallthru
          _
        // Predicated region
        $region17: #{tpu_custom_call.1} parent=11 // pred_check
          %p228 = pneg %p98
        $region18: #{tpu_custom_call.1} parent=11 // pred_check_branch
          %230 = sbr.rel (%p228) target = $region20
        $region19: #{tpu_custom_call.1} parent=11 // pred_region
          _
        $region20: #{tpu_custom_call.1} parent=11 // pred_fallthru
          _
        // Predicated region
        $region21: #{tpu_custom_call.1} parent=11 // pred_check
          %p231 = pneg %p119
        $region22: #{tpu_custom_call.1} parent=11 // pred_check_branch
          %233 = sbr.rel (%p231) target = $region24
        $region23: #{tpu_custom_call.1} parent=11 // pred_region
          _
        $region24: #{tpu_custom_call.1} parent=11 // pred_fallthru
          _
        // Predicated region
        $region25: #{tpu_custom_call.1} parent=11 // pred_check
          %p234 = pneg %p140
        $region26: #{tpu_custom_call.1} parent=11 // pred_check_branch
          %236 = sbr.rel (%p234) target = $region28
        $region27: #{tpu_custom_call.1} parent=11 // pred_region
          _
        $region28: #{tpu_custom_call.1} parent=11 // pred_fallthru
          _
        // Predicated region
        $region29: #{tpu_custom_call.1} parent=11 // pred_check
          %p237 = pneg %p161
        $region30: #{tpu_custom_call.1} parent=11 // pred_check_branch
          %239 = sbr.rel (%p237) target = $region32
        $region31: #{tpu_custom_call.1} parent=11 // pred_region
          _
        $region32: #{tpu_custom_call.1} parent=11 // pred_fallthru
          _
        // Predicated region
        $region33: #{tpu_custom_call.1} parent=11 // pred_check
          %p240 = pneg %p182
        $region34: #{tpu_custom_call.1} parent=11 // pred_check_branch
          %242 = sbr.rel (%p240) target = $region36
        $region35: #{tpu_custom_call.1} parent=11 // pred_region
          _
        $region36: #{tpu_custom_call.1} parent=11 // pred_fallthru
          _
      $region12: #{tpu_custom_call.1} parent=5 // pred_fallthru
        _
      %p243 = scmp.lt.s32.totalorder %s16, 2
      // Predicated region
      $region37: #{tpu_custom_call.1} parent=5 // pred_check
        %p244 = pneg %p243
      $region38: #{tpu_custom_call.1} parent=5 // pred_check_branch
        %246 = sbr.rel (%p244) target = $region40
      $region39: #{tpu_custom_call.1} parent=5 // pred_region
        // Predicated region
        $region41: #{tpu_custom_call.1} parent=39 // pred_check
          %p247 = pneg %p50
        $region42: #{tpu_custom_call.1} parent=39 // pred_check_branch
          %249 = sbr.rel (%p247) target = $region44
        $region43: #{tpu_custom_call.1} parent=39 // pred_region
          %p250 = scmp.lt.s32.totalorder %s23, 1
          %s251 = scalar_select %p250, %s23, 1
          %p252 = scmp.lt.s32.totalorder %s24, 0
          %s253 = scalar_select %p252, %s24, 0
          %s254 = sadd.s32 %s253, %s251
          %s255 = smul.addr %s254, 8
          %s256 = scalar_lea.vmem %s0, %s255
        $region44: #{tpu_custom_call.1} parent=39 // pred_fallthru
          _
      $region40: #{tpu_custom_call.1} parent=5 // pred_fallthru
        _
      %p257 = scmp.le.s32.totalorder 1, %s16
      %p258 = scmp.lt.s32.totalorder %s16, 3
      %p259 = pnand %p257, %p258
      %p260 = pneg %p259
      // Predicated region
      $region45: #{tpu_custom_call.1} parent=5 // pred_check
        _
      $region46: #{tpu_custom_call.1} parent=5 // pred_check_branch
        %262 = sbr.rel (%p259) target = $region48
      $region47: #{tpu_custom_call.1} parent=5 // pred_region
        %s263 = ssub.s32 %s16, 1
        %p264 = scmp.lt.s32.totalorder %s25, 1
        %s265 = scalar_select %p264, %s25, 1
        %p266 = scmp.lt.s32.totalorder %s26, 0
        %s267 = scalar_select %p266, %s26, 0
        %s268 = sadd.s32 %s267, %s265
        %s269 = smul.addr %s268, 8
        %s270 = scalar_lea.vmem %s0, %s269
        %p271 = pneg %p56
        %p272 = pneg %p53
        %p273 = pneg %p77
        %p274 = pneg %p74
        %p275 = pneg %p98
        %p276 = pneg %p95
        %p277 = pneg %p119
        %p278 = pneg %p116
        %p279 = pneg %p140
        %p280 = pneg %p137
        %p281 = pneg %p161
        %p282 = pneg %p158
        %p283 = pneg %p182
        %p284 = pneg %p179
        %p285 = pneg %p210
        %p286 = pneg %p207
        %s287 = sand.u32 %s197, 1
        %s288 = scalar_lea.sflag [#allocation5], %s287
        %s289 = sand.u32 %s197, 1
        %s290 = smul.addr %s289, 8
        %s291 = scalar_lea.vmem [#allocation4], %s290
        %p292 = scmp.lt.s32.totalorder %s25, 1
        %s293 = scalar_select %p292, %s25, 1
        %p294 = scmp.lt.s32.totalorder %s26, 0
        %s295 = scalar_select %p294, %s26, 0
        %s296 = sadd.s32 %s295, %s293
        %s297 = smul.addr %s296, 8
        %s298 = scalar_lea.vmem %s0, %s297
        %v299 = vld [vmem:[%s298] sm:$0xff]
        %301 = vrot.lane.b32.xlu0 %v299, 11
        %v302 = vpop.permute.xlu0 %301
        %vm304 = vcmask 351320
        %305 = vst.msk [vmem:[#allocation2] sm:$0xff] %vm304, %v302
        %vm306 = vcmask 89088
        %307 = vst.msk [vmem:[#allocation2] sm:$0xff] %vm306, 0.0
        %vm308 = vcmask 441688
        %309 = vst.msk [vmem:[#allocation2] sm:$0xff] %vm308, 0.0
        %v310 = vld [vmem:[%s1] sm:$0xff]
        %v311 = vld [vmem:[#allocation2] sm:$0xff]
        %313 = vset.pattern.permute.xlu0 0
        %314 = vperm.xlu0 %313, %v310
        %v315 = vpop.permute.xlu0 %314
        %v317 = vmul.f32 %v311, %v315
        %318 = vset.pattern.permute.xlu0 1
        %319 = vperm.xlu0 %318, %v310
        %v320 = vpop.permute.xlu0 %319
        %v322 = vmul.f32 %v311, %v320
        %324 = vrot.lane.b32.xlu0 %v322, 127
        %v325 = vpop.permute.xlu0 %324
        %v327 = vadd.f32 %v317, %v325
        %328 = vset.pattern.permute.xlu0 2
        %329 = vperm.xlu0 %328, %v310
        %v330 = vpop.permute.xlu0 %329
        %v332 = vmul.f32 %v311, %v330
        %334 = vrot.lane.b32.xlu0 %v332, 126
        %v335 = vpop.permute.xlu0 %334
        %v337 = vadd.f32 %v327, %v335
        %338 = vset.pattern.permute.xlu0 3
        %339 = vperm.xlu0 %338, %v310
        %v340 = vpop.permute.xlu0 %339
        %v342 = vmul.f32 %v311, %v340
        %344 = vrot.lane.b32.xlu0 %v342, 125
        %v345 = vpop.permute.xlu0 %344
        %v347 = vadd.f32 %v337, %v345
        %348 = vset.pattern.permute.xlu0 4
        %349 = vperm.xlu0 %348, %v310
        %v350 = vpop.permute.xlu0 %349
        %v352 = vmul.f32 %v311, %v350
        %354 = vrot.lane.b32.xlu0 %v352, 124
        %v355 = vpop.permute.xlu0 %354
        %v357 = vadd.f32 %v347, %v355
        %v358 = vld [vmem:[%s2] sm:$0xff]
        %360 = vset.pattern.permute.xlu0 0
        %361 = vperm.xlu0 %360, %v358
        %v362 = vpop.permute.xlu0 %361
        %v364 = vadd.f32 %v357, %v362
        %vm365 = vcmask 408576
        %366 = vst.msk [vmem:[#allocation3] sm:$0xff] %vm365, %v364
        %p367 = scmp.eq.s32.totalorder %s26, 0
        %s368 = sadd.s32 %s26, 1
        %s369 = smul.u32 %s368, 32
        %s370 = sadd.s32 %s369, 9
        %p371 = scmp.gt.s32.totalorder %s370, 32
        %p372 = por %p367, %p371
        // Predicated region
        $region49: #{tpu_custom_call.1} parent=47 // pred_check
          %p373 = pneg %p372
        $region50: #{tpu_custom_call.1} parent=47 // pred_check_branch
          %375 = sbr.rel (%p373) target = $region52
        $region51: #{tpu_custom_call.1} parent=47 // pred_region
          %v376 = vlaneseq
          %v377 = vand.u32 %v376, 127
          %s378 = smul.u32 %s26, 32
          %s379 = ssub.s32 %s378, 9
          %v380 = vstv %s379
          %v381 = vadd.s32 %v380, %v377
          %vm382 = vcmp.ge.s32.totalorder %v381, 0
          %vm383 = vcmp.lt.s32.totalorder %v381, 32
          %vm384 = vmand %vm382, %vm383
          %v385 = vld [vmem:[#allocation3] sm:$0xff]
          %v386 = vsel %vm384, 1, 0
          %vm387 = vcmp.eq.s32.totalorder %v386, 1
          %v388 = vsel %vm387, %v385, 0.0
          %389 = vst.msk [vmem:[#allocation3] sm:$0xff] %vm365, %v388
        $region52: #{tpu_custom_call.1} parent=47 // pred_fallthru
          _
        %v390 = vld [vmem:[%s3] sm:$0xff]
        %v391 = vld [vmem:[#allocation3] sm:$0xff]
        %393 = vset.pattern.permute.xlu0 0
        %394 = vperm.xlu0 %393, %v390
        %v395 = vpop.permute.xlu0 %394
        %v397 = vmul.f32 %v391, %v395
        %398 = vset.pattern.permute.xlu0 1
        %399 = vperm.xlu0 %398, %v390
        %v400 = vpop.permute.xlu0 %399
        %v402 = vmul.f32 %v391, %v400
        %404 = vrot.lane.b32.xlu0 %v402, 125
        %v405 = vpop.permute.xlu0 %404
        %v407 = vadd.f32 %v397, %v405
        %408 = vset.pattern.permute.xlu0 2
        %409 = vperm.xlu0 %408, %v390
        %v410 = vpop.permute.xlu0 %409
        %v412 = vmul.f32 %v391, %v410
        %414 = vrot.lane.b32.xlu0 %v412, 122
        %v415 = vpop.permute.xlu0 %414
        %v417 = vadd.f32 %v407, %v415
        %418 = vset.pattern.permute.xlu0 3
        %419 = vperm.xlu0 %418, %v390
        %v420 = vpop.permute.xlu0 %419
        %v422 = vmul.f32 %v391, %v420
        %424 = vrot.lane.b32.xlu0 %v422, 119
        %v425 = vpop.permute.xlu0 %424
        %v427 = vadd.f32 %v417, %v425
        %428 = vset.pattern.permute.xlu0 4
        %429 = vperm.xlu0 %428, %v390
        %v430 = vpop.permute.xlu0 %429
        %v432 = vmul.f32 %v391, %v430
        %434 = vrot.lane.b32.xlu0 %v432, 116
        %v435 = vpop.permute.xlu0 %434
        %v437 = vadd.f32 %v427, %v435
        %438 = vset.pattern.permute.xlu0 5
        %439 = vperm.xlu0 %438, %v390
        %v440 = vpop.permute.xlu0 %439
        %v442 = vmul.f32 %v391, %v440
        %444 = vrot.lane.b32.xlu0 %v442, 113
        %v445 = vpop.permute.xlu0 %444
        %v447 = vadd.f32 %v437, %v445
        %448 = vset.pattern.permute.xlu0 6
        %449 = vperm.xlu0 %448, %v390
        %v450 = vpop.permute.xlu0 %449
        %v452 = vmul.f32 %v391, %v450
        %454 = vrot.lane.b32.xlu0 %v452, 110
        %v455 = vpop.permute.xlu0 %454
        %v457 = vadd.f32 %v447, %v455
        %v458 = vld [vmem:[%s4] sm:$0xff]
        %460 = vset.pattern.permute.xlu0 0
        %461 = vperm.xlu0 %460, %v458
        %v462 = vpop.permute.xlu0 %461
        %v464 = vadd.f32 %v457, %v462
        %v465 = vld [vmem:[%s5] sm:$0xff]
        %v466 = vld [vmem:[%s6] sm:$0xff]
        %468 = vset.pattern.permute.xlu0 0
        %469 = vperm.xlu0 %468, %v466
        %v470 = vpop.permute.xlu0 %469
        %vm472 = vcmask 64512
        %v474 = vsel %vm472, %v465, 0
        %476 = vmatprep.subr.mxu0 0.0
        %477 = vmatpush1.msra.mxu0 %v464
        %478 = vmatprep.subr.mxu0 0.0
        %479 = vmatpush1.msra.mxu0 0.0
        %480 = vmatprep.subr.mxu0 0.0
        %481 = vmatpush1.msra.mxu0 0.0
        %482 = vmatprep.subr.mxu0 0.0
        %483 = vmatpush1.msra.mxu0 0.0
        %484 = vmatprep.subr.mxu0 0.0
        %485 = vmatpush1.msra.mxu0 0.0
        %486 = vmatprep.subr.mxu0 0.0
        %487 = vmatpush1.msra.mxu0 0.0
        %488 = vmatprep.subr.mxu0 0.0
        %489 = vmatpush1.msra.mxu0 0.0
        %490 = vmatprep.subr.mxu0 0.0
        %491 = vmatpush1.msra.mxu0 0.0
        %492 = vmatprep.subr.mxu0 0.0
        %493 = vmatpush1.msra.mxu0 0.0
        %494 = vmatprep.subr.mxu0 0.0
        %495 = vmatpush1.msra.mxu0 0.0
        %496 = vmatprep.subr.mxu0 0.0
        %497 = vmatpush1.msra.mxu0 0.0
        %498 = vmatprep.subr.mxu0 0.0
        %499 = vmatpush1.msra.mxu0 0.0
        %500 = vmatprep.subr.mxu0 0.0
        %501 = vmatpush1.msra.mxu0 0.0
        %502 = vmatprep.subr.mxu0 0.0
        %503 = vmatpush1.msra.mxu0 0.0
        %504 = vmatprep.subr.mxu0 0.0
        %505 = vmatpush1.msra.mxu0 0.0
        %506 = vmatprep.subr.mxu0 0.0
        %507 = vmatpush1.msra.mxu0 0.0
        %508 = vmatprep.subr.mxu0 0.0
        %509 = vmatpush1.msra.mxu0 0.0
        %510 = vmatprep.subr.mxu0 0.0
        %511 = vmatpush1.msra.mxu0 0.0
        %512 = vmatprep.subr.mxu0 0.0
        %513 = vmatpush1.msra.mxu0 0.0
        %514 = vmatprep.subr.mxu0 0.0
        %515 = vmatpush1.msra.mxu0 0.0
        %516 = vmatprep.subr.mxu0 0.0
        %517 = vmatpush1.msra.mxu0 0.0
        %518 = vmatprep.subr.mxu0 0.0
        %519 = vmatpush1.msra.mxu0 0.0
        %520 = vmatprep.subr.mxu0 0.0
        %521 = vmatpush1.msra.mxu0 0.0
        %522 = vmatprep.subr.mxu0 0.0
        %523 = vmatpush1.msra.mxu0 0.0
        %524 = vmatprep.subr.mxu0 0.0
        %525 = vmatpush1.msra.mxu0 0.0
        %526 = vmatprep.subr.mxu0 0.0
        %527 = vmatpush1.msra.mxu0 0.0
        %528 = vmatprep.subr.mxu0 0.0
        %529 = vmatpush1.msra.mxu0 0.0
        %530 = vmatprep.subr.mxu0 0.0
        %531 = vmatpush1.msra.mxu0 0.0
        %532 = vmatprep.subr.mxu0 0.0
        %533 = vmatpush1.msra.mxu0 0.0
        %534 = vmatprep.subr.mxu0 0.0
        %535 = vmatpush1.msra.mxu0 0.0
        %536 = vmatprep.subr.mxu0 0.0
        %537 = vmatpush1.msra.mxu0 0.0
        %538 = vmatprep.subr.mxu0 0.0
        %539 = vmatpush1.msra.mxu0 0.0
        %540 = vmatprep.mubr.f32.mxu0 0.0
        %541 = vmatmul.mubr.f32.gmra.mrb[0].mxu0 %v474
        %v542 = vpop.f32.mrb[0].mxu0
        %v543 = vadd.f32 %v470, %v542
        %v544 = vpop.f32.mrb[0].mxu0
        %545 = vdwg.mxu0
        %v546 = vmul.f32 %v299, %v543
        %vm547 = vcmask 261120
        %548 = vst.msk [vmem:[%s291] sm:$0xff] %vm547, %v546
        %s549 = sand.u32 %s197, 1
        %s550 = scalar_lea.sflag [#allocation5], %s549
        %s551 = sand.u32 %s197, 1
        %s552 = smul.addr %s551, 8
        %s553 = scalar_lea.vmem [#allocation4], %s552
        // Predicated region
        $region53: #{tpu_custom_call.1} parent=47 // pred_check
          %p554 = pneg %p207
        $region54: #{tpu_custom_call.1} parent=47 // pred_check_branch
          %556 = sbr.rel (%p554) target = $region56
        $region55: #{tpu_custom_call.1} parent=47 // pred_region
          %s558 = ssub.s32 128, 128
          %559 = vsyncadd %s550, %s558
          %s560 = sadd.s32 %s26, %s25
          %s561 = smul.addr %s560, 128
          %s562 = scalar_lea.hbm %s7, %s561
          %s564 = sshll.u32 %s553, 4
          %s565 = int_to_ptr.vmem [resolvable:$true] %s564
          %567 = dma.vmem_to_hbm [thread:$0]  %s565, 128, %s562, %s550
        $region56: #{tpu_custom_call.1} parent=47 // pred_fallthru
          _
      $region48: #{tpu_custom_call.1} parent=5 // pred_fallthru
        _
      %p568 = scmp.le.s32.totalorder 2, %s16
      // Predicated region
      $region57: #{tpu_custom_call.1} parent=5 // pred_check
        %p569 = pneg %p568
      $region58: #{tpu_custom_call.1} parent=5 // pred_check_branch
        %571 = sbr.rel (%p569) target = $region60
      $region59: #{tpu_custom_call.1} parent=5 // pred_region
        %s572 = ssub.s32 %s16, 2
        // Predicated region
        $region61: #{tpu_custom_call.1} parent=59 // pred_check
          %p573 = pneg %p213
        $region62: #{tpu_custom_call.1} parent=59 // pred_check_branch
          %575 = sbr.rel (%p573) target = $region64
        $region63: #{tpu_custom_call.1} parent=59 // pred_region
          %s576 = sand.u32 %s198, 1
          %s577 = scalar_lea.sflag [#allocation5], %s576
          %s578 = sand.u32 %s198, 1
          %s579 = smul.addr %s578, 8
          %s580 = scalar_lea.vmem [#allocation4], %s579
          %581 = dma.done %s577, 128
        $region64: #{tpu_custom_call.1} parent=59 // pred_fallthru
          _
      $region60: #{tpu_custom_call.1} parent=5 // pred_fallthru
        _
    $region6: #{tpu_custom_call.1} parent=1 // loop_footer
      %s20 = sadd.s32 1, %s16
    $region7: #{tpu_custom_call.1} parent=1 // loop_footer_branch
      %15 = sbr.rel target = $region3
    $region8: #{tpu_custom_call.1} parent=1 // loop_exit
      _
    %582 = vsyncpa [#allocation5], 1
    %s583 = scalar_lea.sflag [#allocation5], 1
    %584 = vsyncpa %s583, 1

</llo_original>
